<compile_context>
chip_gen: v7x
topology: tpu7x:2x2x1
jax: 0.10.0
libtpu: 0.0.40
codegen_flags: <defaults>
</compile_context>

<pallas_src>
import numpy as np
import jax
import jax.numpy as jnp
from jax import lax
from jax.experimental import pallas as pl
from jax.experimental.pallas import tpu as pltpu


# ---------------------------------------------------------------------------
# Kernel
# ---------------------------------------------------------------------------
def v_mlp_kernel(x_ref, w1_ref, w2_ref, w3_ref, pk_ref, o_ref):
    """x: (Bt, S); w1: (H, S); w2: (H, H); w3: (1, H); pk: (H, 3) = [b1|b2|b3].

    All matmuls accumulate in f32 on the MXU; intermediates are kept in
    (features, batch) layout so the batch stays on the lane axis.
    """
    ep_dtype = pk_ref.dtype      # epilogue (bias-add / ReLU) dtype
    w_dtype = w2_ref.dtype       # MXU input dtype

    # Layer 1: contract S of both (H, S) and (Bt, S) -> (H, Bt), f32 acc.
    h = lax.dot_general(w1_ref[...], x_ref[...],
                        dimension_numbers=(((1,), (1,)), ((), ())),
                        preferred_element_type=jnp.float32)
    h = jnp.maximum(h.astype(ep_dtype) + pk_ref[:, 0:1], 0)

    # Layer 2: (H, H) @ (H, Bt) -> (H, Bt), f32 acc.
    h = jnp.dot(w2_ref[...], h.astype(w_dtype),
                preferred_element_type=jnp.float32)
    h = jnp.maximum(h.astype(ep_dtype) + pk_ref[:, 1:2], 0)

    # Layer 3 (single output unit) on the MXU: (1, H) @ (H, Bt) -> (1, Bt).
    v = jnp.dot(w3_ref[...], h.astype(w_dtype),
                preferred_element_type=jnp.float32)
    v = v + pk_ref[0:1, 2:3].astype(jnp.float32)
    o_ref[...] = v.astype(o_ref.dtype)


# ---------------------------------------------------------------------------
# Tiling / dtype policy
# ---------------------------------------------------------------------------
def _tpu_kind():
    try:
        return jax.devices()[0].device_kind.lower()
    except Exception:
        return ""


def _round_up(x, m):
    return ((x + m - 1) // m) * m


def _default_epilogue_dtype(compute_dtype):
    # v5e's VPU has no native bf16 -> keep bias-add/ReLU in f32 there.
    if np.dtype(compute_dtype) == np.dtype(jnp.bfloat16) and "v5" not in _tpu_kind():
        return jnp.bfloat16
    return jnp.float32


def _pick_batch_tile(B, kind):
    """Generation-aware batch tile (lane axis = batch)."""
    if "v7" in kind:
        # 2 TensorCores: an even number of 128-aligned tiles, up to 2048 lanes.
        if B <= 256:
            return B
        return min(_round_up(pl.cdiv(B, 2), 128), 2048)
    # 1 TensorCore (v5e / v6e): one grid step unless the batch is huge.
    if B <= 4096:
        return B
    return 2048


# ---------------------------------------------------------------------------
# One-time parameter preparation (hoisted out of the per-call path)
# ---------------------------------------------------------------------------
def prepare_params(params, compute_dtype=jnp.bfloat16, epilogue_dtype=None):
    """Cast / reshape / pack PyTorch-layout params once.

    Returns (w1c (H,S), w2c (H,H), w3_row (1,H), packed_biases (H,3)).
    """
    if epilogue_dtype is None:
        epilogue_dtype = _default_epilogue_dtype(compute_dtype)
    w1, b1, w2, b2, w3, b3 = params           # PyTorch layout: w (out, in)
    H = w1.shape[0]
    w1c = jnp.asarray(w1, compute_dtype)                       # (H, S)
    w2c = jnp.asarray(w2, compute_dtype)                       # (H, H)
    w3r = jnp.asarray(w3, compute_dtype).reshape(1, H)         # (1, H)
    pk = jnp.concatenate(
        [jnp.asarray(b1, jnp.float32).reshape(H, 1),
         jnp.asarray(b2, jnp.float32).reshape(H, 1),
         jnp.broadcast_to(jnp.asarray(b3, jnp.float32).reshape(1, 1), (H, 1))],
        axis=1).astype(epilogue_dtype)                         # (H, 3)
    return (w1c, w2c, w3r, pk)


# ---------------------------------------------------------------------------
# Forward
# ---------------------------------------------------------------------------
def v_forward(state, prepared, *, batch_tile=None):
    """Run the V network. state: (B, state_dim) f32. Returns (B, 1) f32."""
    w1c, w2c, w3r, pk = prepared
    compute_dtype = w1c.dtype
    B, S = state.shape
    H = w1c.shape[0]

    if batch_tile is None:
        batch_tile = _pick_batch_tile(B, _tpu_kind())
    B_pad = _round_up(B, batch_tile)
    num_tiles = B_pad // batch_tile

    x = state.astype(compute_dtype)
    if B_pad != B:
        x = jnp.pad(x, ((0, B_pad - B), (0, 0)))

    out = pl.pallas_call(
        v_mlp_kernel,
        out_shape=jax.ShapeDtypeStruct((1, B_pad), jnp.float32),
        grid_spec=pltpu.PrefetchScalarGridSpec(
            num_scalar_prefetch=0,
            grid=(num_tiles,),
            in_specs=[
                # batch-tiled activations, contiguous rows (no host transpose)
                pl.BlockSpec((batch_tile, S), lambda i: (i, 0)),
                # weights / packed biases: full arrays, same block every step
                pl.BlockSpec((H, S), lambda i: (0, 0)),
                pl.BlockSpec((H, H), lambda i: (0, 0)),
                pl.BlockSpec((1, H), lambda i: (0, 0)),
                pl.BlockSpec((H, 3), lambda i: (0, 0)),
            ],
            out_specs=pl.BlockSpec((1, batch_tile), lambda i: (0, i)),
        ),
        compiler_params=pltpu.CompilerParams(
            dimension_semantics=("parallel",)),
    )(x, w1c, w2c, w3r, pk)

    return out[:, :B].reshape(B, 1)


# ---------------------------------------------------------------------------
# Reference / init
# ---------------------------------------------------------------------------
def init_params(key, state_dim, hidden=256):
    """Deterministic init mimicking PyTorch nn.Linear default, PyTorch layout."""
    ks = jax.random.split(key, 6)

    def linear(kw, kb, fan_in, fan_out):
        bound = 1.0 / jnp.sqrt(fan_in)
        w = jax.random.uniform(kw, (fan_out, fan_in), jnp.float32, -bound, bound)
        b = jax.random.uniform(kb, (fan_out,), jnp.float32, -bound, bound)
        return w, b

    w1, b1 = linear(ks[0], ks[1], state_dim, hidden)
    w2, b2 = linear(ks[2], ks[3], hidden, hidden)
    w3, b3 = linear(ks[4], ks[5], hidden, 1)
    return (w1, b1, w2, b2, w3, b3)


def v_reference(state, params):
    w1, b1, w2, b2, w3, b3 = params
    h = jnp.maximum(state @ w1.T + b1, 0.0)
    h = jnp.maximum(h @ w2.T + b2, 0.0)
    return h @ w3.T + b3


if __name__ == "__main__":
    key = jax.random.PRNGKey(0)
    k_state, k_params, k_state2 = jax.random.split(key, 3)

    state_dim = 16
    params = init_params(k_params, state_dim)

    # --- f32 path, small inference-style batch (single grid step) ---
    B_small = 16
    state = jax.random.normal(k_state, (B_small, state_dim), dtype=jnp.float32)
    prep_f32 = prepare_params(params, compute_dtype=jnp.float32,
                              epilogue_dtype=jnp.float32)
    out = jax.block_until_ready(v_forward(state, prep_f32))
    ref = v_reference(state, params)
    assert out.shape == (B_small, 1), out.shape
    assert jnp.allclose(out, ref, atol=1e-4, rtol=1e-4), "f32 small-batch mismatch"

    # --- f32 path, larger training-style batch (exercises tiling/padding) ---
    B_big = 512
    state_big = jax.random.normal(k_state2, (B_big, state_dim), dtype=jnp.float32)
    out_big = jax.block_until_ready(v_forward(state_big, prep_f32))
    ref_big = v_reference(state_big, params)
    assert out_big.shape == (B_big, 1), out_big.shape
    assert jnp.allclose(out_big, ref_big, atol=1e-4, rtol=1e-4), "f32 tiled mismatch"

    # --- default bf16 MXU path (f32 accumulation), looser tolerance ---
    # NOTE: the bf16 path casts the input state and the inter-layer
    # activations to bf16 (weights too); fine for an RL value net.
    prep_bf16 = prepare_params(params)                  # bf16 default
    out_bf16 = jax.block_until_ready(v_forward(state_big, prep_bf16))
    assert jnp.allclose(out_bf16, ref_big, atol=1e-1, rtol=1e-1), "bf16 mismatch"

    print("KERNEL_OK")
</pallas_src>

<mosaic_0001>
module attributes {stable_mosaic.version = 11 : i64} {
  func.func @v_mlp_kernel(%arg0: i32, %arg1: memref<16x16xf32, #tpu.memory_space<vmem>>, %arg2: memref<256x16xf32, #tpu.memory_space<vmem>>, %arg3: memref<256x256xf32, #tpu.memory_space<vmem>>, %arg4: memref<1x256xf32, #tpu.memory_space<vmem>>, %arg5: memref<256x3xf32, #tpu.memory_space<vmem>>, %arg6: memref<1x16xf32, #tpu.memory_space<vmem>>) attributes {dimension_semantics = [#tpu.dimension_semantics<parallel>], iteration_bounds = array<i64: 1>, scalar_prefetch = 0 : i64, scratch_operands = 0 : i64, tpu.core_type = #tpu.core_type<tc>, window_params = [{transform_indices = @transform_0, window_bounds = array<i64: 16, 16>}, {pipeline_mode = #tpu.pipeline_mode<synchronous>, transform_indices = @transform_1, window_bounds = array<i64: 256, 16>}, {pipeline_mode = #tpu.pipeline_mode<synchronous>, transform_indices = @transform_2, window_bounds = array<i64: 256, 256>}, {pipeline_mode = #tpu.pipeline_mode<synchronous>, transform_indices = @transform_3, window_bounds = array<i64: 1, 256>}, {pipeline_mode = #tpu.pipeline_mode<synchronous>, transform_indices = @transform_4, window_bounds = array<i64: 256, 3>}, {transform_indices = @transform_5, window_bounds = array<i64: 1, 16>}]} {
    %c0 = arith.constant 0 : index
    %c0_0 = arith.constant 0 : index
    %0 = vector.load %arg2[%c0, %c0_0] : memref<256x16xf32, #tpu.memory_space<vmem>>, vector<256x16xf32>
    %c0_1 = arith.constant 0 : index
    %c0_2 = arith.constant 0 : index
    %1 = vector.load %arg1[%c0_1, %c0_2] : memref<16x16xf32, #tpu.memory_space<vmem>>, vector<16x16xf32>
    %cst = arith.constant dense<0.000000e+00> : vector<256x16xf32>
    %2 = tpu.matmul %0, %1, %cst {dimension_numbers = #tpu.dot_dimension_numbers<[1], [1], [0], [0], [0, 0, 1, 0], [], []>} : vector<256x16xf32>, vector<16x16xf32>, vector<256x16xf32> -> vector<256x16xf32>
    %c0_3 = arith.constant 0 : index
    %c0_4 = arith.constant 0 : index
    %3 = vector.load %arg5[%c0_3, %c0_4] : memref<256x3xf32, #tpu.memory_space<vmem>>, vector<256x1xf32>
    %4 = vector.broadcast %3 : vector<256x1xf32> to vector<256x16xf32>
    %5 = arith.addf %2, %4 : vector<256x16xf32>
    %cst_5 = arith.constant 0.000000e+00 : f32
    %6 = vector.broadcast %cst_5 : f32 to vector<256x16xf32>
    %7 = arith.maximumf %5, %6 : vector<256x16xf32>
    %c0_6 = arith.constant 0 : index
    %c0_7 = arith.constant 0 : index
    %8 = vector.load %arg3[%c0_6, %c0_7] : memref<256x256xf32, #tpu.memory_space<vmem>>, vector<256x256xf32>
    %cst_8 = arith.constant dense<0.000000e+00> : vector<256x16xf32>
    %9 = tpu.matmul %8, %7, %cst_8 {dimension_numbers = #tpu.dot_dimension_numbers<[1], [0], [0], [1], [0, 0, 1, 1], [], []>} : vector<256x256xf32>, vector<256x16xf32>, vector<256x16xf32> -> vector<256x16xf32>
    %c0_9 = arith.constant 0 : index
    %c1 = arith.constant 1 : index
    %10 = vector.load %arg5[%c0_9, %c1] : memref<256x3xf32, #tpu.memory_space<vmem>>, vector<256x1xf32>
    %11 = vector.broadcast %10 : vector<256x1xf32> to vector<256x16xf32>
    %12 = arith.addf %9, %11 : vector<256x16xf32>
    %cst_10 = arith.constant 0.000000e+00 : f32
    %13 = vector.broadcast %cst_10 : f32 to vector<256x16xf32>
    %14 = arith.maximumf %12, %13 : vector<256x16xf32>
    %c0_11 = arith.constant 0 : index
    %c0_12 = arith.constant 0 : index
    %15 = vector.load %arg4[%c0_11, %c0_12] : memref<1x256xf32, #tpu.memory_space<vmem>>, vector<1x256xf32>
    %cst_13 = arith.constant dense<0.000000e+00> : vector<1x16xf32>
    %16 = tpu.matmul %15, %14, %cst_13 {dimension_numbers = #tpu.dot_dimension_numbers<[1], [0], [0], [1], [0, 0, 1, 1], [], []>} : vector<1x256xf32>, vector<256x16xf32>, vector<1x16xf32> -> vector<1x16xf32>
    %c0_14 = arith.constant 0 : index
    %c2 = arith.constant 2 : index
    %17 = vector.load %arg5[%c0_14, %c2] : memref<256x3xf32, #tpu.memory_space<vmem>>, vector<1x1xf32>
    %18 = vector.broadcast %17 : vector<1x1xf32> to vector<1x16xf32>
    %19 = arith.addf %16, %18 : vector<1x16xf32>
    %c0_15 = arith.constant 0 : index
    %c0_16 = arith.constant 0 : index
    %20 = vector.load %arg6[%c0_15, %c0_16] : memref<1x16xf32, #tpu.memory_space<vmem>>, vector<1x16xf32>
    tpu.vector_store %arg6[%c0_15, %c0_16], %19 {strides = array<i32>} : memref<1x16xf32, #tpu.memory_space<vmem>>, vector<1x16xf32>,
    return
  }
  func.func @transform_0(%arg0: i32) -> (i32, i32) {
    %c0_i32 = arith.constant 0 : i32
    %c0_i32_0 = arith.constant 0 : i32
    return %arg0, %c0_i32 : i32, i32
  }
  func.func @transform_1(%arg0: i32) -> (i32, i32) {
    %c0_i32 = arith.constant 0 : i32
    %c0_i32_0 = arith.constant 0 : i32
    %c0_i32_1 = arith.constant 0 : i32
    return %c0_i32, %c0_i32_0 : i32, i32
  }
  func.func @transform_2(%arg0: i32) -> (i32, i32) {
    %c0_i32 = arith.constant 0 : i32
    %c0_i32_0 = arith.constant 0 : i32
    %c0_i32_1 = arith.constant 0 : i32
    return %c0_i32, %c0_i32_0 : i32, i32
  }
  func.func @transform_3(%arg0: i32) -> (i32, i32) {
    %c0_i32 = arith.constant 0 : i32
    %c0_i32_0 = arith.constant 0 : i32
    %c0_i32_1 = arith.constant 0 : i32
    return %c0_i32, %c0_i32_0 : i32, i32
  }
  func.func @transform_4(%arg0: i32) -> (i32, i32) {
    %c0_i32 = arith.constant 0 : i32
    %c0_i32_0 = arith.constant 0 : i32
    %c0_i32_1 = arith.constant 0 : i32
    return %c0_i32, %c0_i32_0 : i32, i32
  }
  func.func @transform_5(%arg0: i32) -> (i32, i32) {
    %c0_i32 = arith.constant 0 : i32
    %c0_i32_0 = arith.constant 0 : i32
    return %c0_i32, %arg0 : i32, i32
  }
}

</mosaic_0001>

<llo_original>
// kernel: tpu_custom_call.1
$region0: #{tpu_custom_call.1}
  #allocation0 [shape = 'u32[]', space=smem, size = 0x4, offset = 0x4, fixed_abs, tag = 'smem constant byte address 0x4 - core index']
  #allocation1 [shape = 'u32[144,128]{1,0:T(1,128)}', space=vmem, size = 0x12000, scoped, tag = 'internal scratch']
  %s0 = inlined_call_operand.vmem [shape: f32[16,16], index: 0, kind: input, shape index: {}]
  %s1 = inlined_call_operand.vmem [shape: f32[256,16], index: 1, kind: input, shape index: {}]
  %s2 = inlined_call_operand.vmem [shape: f32[256,256], index: 2, kind: input, shape index: {}]
  %s3 = inlined_call_operand.vmem [shape: f32[1,256], index: 3, kind: input, shape index: {}]
  %s4 = inlined_call_operand.vmem [shape: f32[256,3], index: 4, kind: input, shape index: {}]
  %s5 = inlined_call_operand.hbm [shape: f32[1,16], index: 5, kind: output, shape index: {}]
  %s6 = sld [smem:[#allocation0]]
  $region30: #{tpu_custom_call.1} parent=0
    _
  %s8 = ssub.s32 1, %s6
  %s9 = scalar_select 0, %s8, %s6
  $region1: #{tpu_custom_call.1} parent=0
    #allocation2 [shape = 'u8[512]{0}', space=vmem, size = 0x400, scoped, tag = 'output window, operand 0, single buffered']
    #allocation3 [shape = 's32[1]{0}', space=sflag, size = 0x4, scoped, tag = 'scoped memory for tpu_custom_call.1']
    %10 = vsyncpa [#allocation3], 0
    // Predicated region
    $region2: #{tpu_custom_call.1} parent=1 // pred_check
      _
    $region3: #{tpu_custom_call.1} parent=1 // pred_check_branch
      %12 = sbr.rel (0) target = $region5
    $region4: #{tpu_custom_call.1} parent=1 // pred_region
      _
    $region5: #{tpu_custom_call.1} parent=1 // pred_fallthru
      _
    // Predicated region
    $region6: #{tpu_custom_call.1} parent=1 // pred_check
      _
    $region7: #{tpu_custom_call.1} parent=1 // pred_check_branch
      %14 = sbr.rel (0) target = $region9
    $region8: #{tpu_custom_call.1} parent=1 // pred_region
      _
    $region9: #{tpu_custom_call.1} parent=1 // pred_fallthru
      _
    // Predicated region
    $region10: #{tpu_custom_call.1} parent=1 // pred_check
      _
    $region11: #{tpu_custom_call.1} parent=1 // pred_check_branch
      %16 = sbr.rel (0) target = $region13
    $region12: #{tpu_custom_call.1} parent=1 // pred_region
      _
    $region13: #{tpu_custom_call.1} parent=1 // pred_fallthru
      _
    // Predicated region
    $region14: #{tpu_custom_call.1} parent=1 // pred_check
      _
    $region15: #{tpu_custom_call.1} parent=1 // pred_check_branch
      %18 = sbr.rel (0) target = $region17
    $region16: #{tpu_custom_call.1} parent=1 // pred_region
      _
    $region17: #{tpu_custom_call.1} parent=1 // pred_fallthru
      _
    // Predicated region
    $region18: #{tpu_custom_call.1} parent=1 // pred_check
      _
    $region19: #{tpu_custom_call.1} parent=1 // pred_check_branch
      %20 = sbr.rel (0) target = $region21
    $region20: #{tpu_custom_call.1} parent=1 // pred_region
      _
    $region21: #{tpu_custom_call.1} parent=1 // pred_fallthru
      _
    %v21 = vld [vmem:[%s1] sm:$0xff]
    %v22 = vld [vmem:[%s1 + $0x8] sm:$0xff]
    %v23 = vld [vmem:[%s1 + $0x10] sm:$0xff]
    %v24 = vld [vmem:[%s1 + $0x18] sm:$0xff]
    %v25 = vld [vmem:[%s1 + $0x20] sm:$0xff]
    %v26 = vld [vmem:[%s1 + $0x28] sm:$0xff]
    %v27 = vld [vmem:[%s1 + $0x30] sm:$0xff]
    %v28 = vld [vmem:[%s1 + $0x38] sm:$0xff]
    %v29 = vld [vmem:[%s1 + $0x40] sm:$0xff]
    %v30 = vld [vmem:[%s1 + $0x48] sm:$0xff]
    %v31 = vld [vmem:[%s1 + $0x50] sm:$0xff]
    %v32 = vld [vmem:[%s1 + $0x58] sm:$0xff]
    %v33 = vld [vmem:[%s1 + $0x60] sm:$0xff]
    %v34 = vld [vmem:[%s1 + $0x68] sm:$0xff]
    %v35 = vld [vmem:[%s1 + $0x70] sm:$0xff]
    %v36 = vld [vmem:[%s1 + $0x78] sm:$0xff]
    %v37 = vld [vmem:[%s1 + $0x80] sm:$0xff]
    %v38 = vld [vmem:[%s1 + $0x88] sm:$0xff]
    %v39 = vld [vmem:[%s1 + $0x90] sm:$0xff]
    %v40 = vld [vmem:[%s1 + $0x98] sm:$0xff]
    %v41 = vld [vmem:[%s1 + $0xa0] sm:$0xff]
    %v42 = vld [vmem:[%s1 + $0xa8] sm:$0xff]
    %v43 = vld [vmem:[%s1 + $0xb0] sm:$0xff]
    %v44 = vld [vmem:[%s1 + $0xb8] sm:$0xff]
    %v45 = vld [vmem:[%s1 + $0xc0] sm:$0xff]
    %v46 = vld [vmem:[%s1 + $0xc8] sm:$0xff]
    %v47 = vld [vmem:[%s1 + $0xd0] sm:$0xff]
    %v48 = vld [vmem:[%s1 + $0xd8] sm:$0xff]
    %v49 = vld [vmem:[%s1 + $0xe0] sm:$0xff]
    %v50 = vld [vmem:[%s1 + $0xe8] sm:$0xff]
    %v51 = vld [vmem:[%s1 + $0xf0] sm:$0xff]
    %v52 = vld [vmem:[%s1 + $0xf8] sm:$0xff]
    %v53 = vld [vmem:[%s0] sm:$0xff]
    %v54 = vld [vmem:[%s0 + $0x8] sm:$0xff]
    %v55 = vld [vmem:[%s4] sm:$0xff]
    %v56 = vld [vmem:[%s4 + $0x8] sm:$0xff]
    %v57 = vld [vmem:[%s4 + $0x10] sm:$0xff]
    %v58 = vld [vmem:[%s4 + $0x18] sm:$0xff]
    %v59 = vld [vmem:[%s4 + $0x20] sm:$0xff]
    %v60 = vld [vmem:[%s4 + $0x28] sm:$0xff]
    %v61 = vld [vmem:[%s4 + $0x30] sm:$0xff]
    %v62 = vld [vmem:[%s4 + $0x38] sm:$0xff]
    %v63 = vld [vmem:[%s4 + $0x40] sm:$0xff]
    %v64 = vld [vmem:[%s4 + $0x48] sm:$0xff]
    %v65 = vld [vmem:[%s4 + $0x50] sm:$0xff]
    %v66 = vld [vmem:[%s4 + $0x58] sm:$0xff]
    %v67 = vld [vmem:[%s4 + $0x60] sm:$0xff]
    %v68 = vld [vmem:[%s4 + $0x68] sm:$0xff]
    %v69 = vld [vmem:[%s4 + $0x70] sm:$0xff]
    %v70 = vld [vmem:[%s4 + $0x78] sm:$0xff]
    %v71 = vld [vmem:[%s4 + $0x80] sm:$0xff]
    %v72 = vld [vmem:[%s4 + $0x88] sm:$0xff]
    %v73 = vld [vmem:[%s4 + $0x90] sm:$0xff]
    %v74 = vld [vmem:[%s4 + $0x98] sm:$0xff]
    %v75 = vld [vmem:[%s4 + $0xa0] sm:$0xff]
    %v76 = vld [vmem:[%s4 + $0xa8] sm:$0xff]
    %v77 = vld [vmem:[%s4 + $0xb0] sm:$0xff]
    %v78 = vld [vmem:[%s4 + $0xb8] sm:$0xff]
    %v79 = vld [vmem:[%s4 + $0xc0] sm:$0xff]
    %v80 = vld [vmem:[%s4 + $0xc8] sm:$0xff]
    %v81 = vld [vmem:[%s4 + $0xd0] sm:$0xff]
    %v82 = vld [vmem:[%s4 + $0xd8] sm:$0xff]
    %v83 = vld [vmem:[%s4 + $0xe0] sm:$0xff]
    %v84 = vld [vmem:[%s4 + $0xe8] sm:$0xff]
    %v85 = vld [vmem:[%s4 + $0xf0] sm:$0xff]
    %v86 = vld [vmem:[%s4 + $0xf8] sm:$0xff]
    %88 = vset.pattern.permute.xlu0 0
    %89 = vperm.xlu0 %88, %v55
    %v90 = vpop.permute.xlu0 %89
    %93 = vset.pattern.permute.xlu0 0
    %94 = vperm.xlu0 %93, %v56
    %v95 = vpop.permute.xlu0 %94
    %98 = vset.pattern.permute.xlu0 0
    %99 = vperm.xlu0 %98, %v57
    %v100 = vpop.permute.xlu0 %99
    %103 = vset.pattern.permute.xlu0 0
    %104 = vperm.xlu0 %103, %v58
    %v105 = vpop.permute.xlu0 %104
    %108 = vset.pattern.permute.xlu0 0
    %109 = vperm.xlu0 %108, %v59
    %v110 = vpop.permute.xlu0 %109
    %113 = vset.pattern.permute.xlu0 0
    %114 = vperm.xlu0 %113, %v60
    %v115 = vpop.permute.xlu0 %114
    %118 = vset.pattern.permute.xlu0 0
    %119 = vperm.xlu0 %118, %v61
    %v120 = vpop.permute.xlu0 %119
    %123 = vset.pattern.permute.xlu0 0
    %124 = vperm.xlu0 %123, %v62
    %v125 = vpop.permute.xlu0 %124
    %128 = vset.pattern.permute.xlu0 0
    %129 = vperm.xlu0 %128, %v63
    %v130 = vpop.permute.xlu0 %129
    %133 = vset.pattern.permute.xlu0 0
    %134 = vperm.xlu0 %133, %v64
    %v135 = vpop.permute.xlu0 %134
    %138 = vset.pattern.permute.xlu0 0
    %139 = vperm.xlu0 %138, %v65
    %v140 = vpop.permute.xlu0 %139
    %143 = vset.pattern.permute.xlu0 0
    %144 = vperm.xlu0 %143, %v66
    %v145 = vpop.permute.xlu0 %144
    %148 = vset.pattern.permute.xlu0 0
    %149 = vperm.xlu0 %148, %v67
    %v150 = vpop.permute.xlu0 %149
    %153 = vset.pattern.permute.xlu0 0
    %154 = vperm.xlu0 %153, %v68
    %v155 = vpop.permute.xlu0 %154
    %158 = vset.pattern.permute.xlu0 0
    %159 = vperm.xlu0 %158, %v69
    %v160 = vpop.permute.xlu0 %159
    %163 = vset.pattern.permute.xlu0 0
    %164 = vperm.xlu0 %163, %v70
    %v165 = vpop.permute.xlu0 %164
    %168 = vset.pattern.permute.xlu0 0
    %169 = vperm.xlu0 %168, %v71
    %v170 = vpop.permute.xlu0 %169
    %173 = vset.pattern.permute.xlu0 0
    %174 = vperm.xlu0 %173, %v72
    %v175 = vpop.permute.xlu0 %174
    %178 = vset.pattern.permute.xlu0 0
    %179 = vperm.xlu0 %178, %v73
    %v180 = vpop.permute.xlu0 %179
    %183 = vset.pattern.permute.xlu0 0
    %184 = vperm.xlu0 %183, %v74
    %v185 = vpop.permute.xlu0 %184
    %188 = vset.pattern.permute.xlu0 0
    %189 = vperm.xlu0 %188, %v75
    %v190 = vpop.permute.xlu0 %189
    %193 = vset.pattern.permute.xlu0 0
    %194 = vperm.xlu0 %193, %v76
    %v195 = vpop.permute.xlu0 %194
    %198 = vset.pattern.permute.xlu0 0
    %199 = vperm.xlu0 %198, %v77
    %v200 = vpop.permute.xlu0 %199
    %203 = vset.pattern.permute.xlu0 0
    %204 = vperm.xlu0 %203, %v78
    %v205 = vpop.permute.xlu0 %204
    %208 = vset.pattern.permute.xlu0 0
    %209 = vperm.xlu0 %208, %v79
    %v210 = vpop.permute.xlu0 %209
    %213 = vset.pattern.permute.xlu0 0
    %214 = vperm.xlu0 %213, %v80
    %v215 = vpop.permute.xlu0 %214
    %218 = vset.pattern.permute.xlu0 0
    %219 = vperm.xlu0 %218, %v81
    %v220 = vpop.permute.xlu0 %219
    %223 = vset.pattern.permute.xlu0 0
    %224 = vperm.xlu0 %223, %v82
    %v225 = vpop.permute.xlu0 %224
    %228 = vset.pattern.permute.xlu0 0
    %229 = vperm.xlu0 %228, %v83
    %v230 = vpop.permute.xlu0 %229
    %233 = vset.pattern.permute.xlu0 0
    %234 = vperm.xlu0 %233, %v84
    %v235 = vpop.permute.xlu0 %234
    %238 = vset.pattern.permute.xlu0 0
    %239 = vperm.xlu0 %238, %v85
    %v240 = vpop.permute.xlu0 %239
    %243 = vset.pattern.permute.xlu0 0
    %244 = vperm.xlu0 %243, %v86
    %v245 = vpop.permute.xlu0 %244
    %vm247 = vcmask 130048
    %v249 = vsel %vm247, %v21, 0
    %v252 = vsel %vm247, %v22, 0
    %v255 = vsel %vm247, %v23, 0
    %v258 = vsel %vm247, %v24, 0
    %v261 = vsel %vm247, %v25, 0
    %v264 = vsel %vm247, %v26, 0
    %v267 = vsel %vm247, %v27, 0
    %v270 = vsel %vm247, %v28, 0
    %v273 = vsel %vm247, %v29, 0
    %v276 = vsel %vm247, %v30, 0
    %v279 = vsel %vm247, %v31, 0
    %v282 = vsel %vm247, %v32, 0
    %v285 = vsel %vm247, %v33, 0
    %v288 = vsel %vm247, %v34, 0
    %v291 = vsel %vm247, %v35, 0
    %v294 = vsel %vm247, %v36, 0
    %v297 = vsel %vm247, %v37, 0
    %v300 = vsel %vm247, %v38, 0
    %v303 = vsel %vm247, %v39, 0
    %v306 = vsel %vm247, %v40, 0
    %v309 = vsel %vm247, %v41, 0
    %v312 = vsel %vm247, %v42, 0
    %v315 = vsel %vm247, %v43, 0
    %v318 = vsel %vm247, %v44, 0
    %v321 = vsel %vm247, %v45, 0
    %v324 = vsel %vm247, %v46, 0
    %v327 = vsel %vm247, %v47, 0
    %v330 = vsel %vm247, %v48, 0
    %v333 = vsel %vm247, %v49, 0
    %v336 = vsel %vm247, %v50, 0
    %v339 = vsel %vm247, %v51, 0
    %v342 = vsel %vm247, %v52, 0
    %v345 = vsel %vm247, %v53, 0
    %v348 = vsel %vm247, %v54, 0
    %350 = vmatprep.subr.mxu0 0.0
    %351 = vmatpush1.xpose.msra.mxu0 %v345
    %352 = vmatprep.subr.mxu0 0.0
    %353 = vmatpush1.xpose.msra.mxu0 %v348
    %354 = vmatprep.subr.mxu0 0.0
    %355 = vmatpush1.xpose.msra.mxu0 0.0
    %356 = vmatprep.subr.mxu0 0.0
    %357 = vmatpush1.xpose.msra.mxu0 0.0
    %358 = vmatprep.subr.mxu0 0.0
    %359 = vmatpush1.xpose.msra.mxu0 0.0
    %360 = vmatprep.subr.mxu0 0.0
    %361 = vmatpush1.xpose.msra.mxu0 0.0
    %362 = vmatprep.subr.mxu0 0.0
    %363 = vmatpush1.xpose.msra.mxu0 0.0
    %364 = vmatprep.subr.mxu0 0.0
    %365 = vmatpush1.xpose.msra.mxu0 0.0
    %366 = vmatprep.subr.mxu0 0.0
    %367 = vmatpush1.xpose.msra.mxu0 0.0
    %368 = vmatprep.subr.mxu0 0.0
    %369 = vmatpush1.xpose.msra.mxu0 0.0
    %370 = vmatprep.subr.mxu0 0.0
    %371 = vmatpush1.xpose.msra.mxu0 0.0
    %372 = vmatprep.subr.mxu0 0.0
    %373 = vmatpush1.xpose.msra.mxu0 0.0
    %374 = vmatprep.subr.mxu0 0.0
    %375 = vmatpush1.xpose.msra.mxu0 0.0
    %376 = vmatprep.subr.mxu0 0.0
    %377 = vmatpush1.xpose.msra.mxu0 0.0
    %378 = vmatprep.subr.mxu0 0.0
    %379 = vmatpush1.xpose.msra.mxu0 0.0
    %380 = vmatprep.subr.mxu0 0.0
    %381 = vmatpush1.xpose.msra.mxu0 0.0
    %382 = vmatprep.subr.mxu0 0.0
    %383 = vmatpush1.xpose.msra.mxu0 0.0
    %384 = vmatprep.subr.mxu0 0.0
    %385 = vmatpush1.xpose.msra.mxu0 0.0
    %386 = vmatprep.subr.mxu0 0.0
    %387 = vmatpush1.xpose.msra.mxu0 0.0
    %388 = vmatprep.subr.mxu0 0.0
    %389 = vmatpush1.xpose.msra.mxu0 0.0
    %390 = vmatprep.subr.mxu0 0.0
    %391 = vmatpush1.xpose.msra.mxu0 0.0
    %392 = vmatprep.subr.mxu0 0.0
    %393 = vmatpush1.xpose.msra.mxu0 0.0
    %394 = vmatprep.subr.mxu0 0.0
    %395 = vmatpush1.xpose.msra.mxu0 0.0
    %396 = vmatprep.subr.mxu0 0.0
    %397 = vmatpush1.xpose.msra.mxu0 0.0
    %398 = vmatprep.subr.mxu0 0.0
    %399 = vmatpush1.xpose.msra.mxu0 0.0
    %400 = vmatprep.subr.mxu0 0.0
    %401 = vmatpush1.xpose.msra.mxu0 0.0
    %402 = vmatprep.subr.mxu0 0.0
    %403 = vmatpush1.xpose.msra.mxu0 0.0
    %404 = vmatprep.subr.mxu0 0.0
    %405 = vmatpush1.xpose.msra.mxu0 0.0
    %406 = vmatprep.subr.mxu0 0.0
    %407 = vmatpush1.xpose.msra.mxu0 0.0
    %408 = vmatprep.subr.mxu0 0.0
    %409 = vmatpush1.xpose.msra.mxu0 0.0
    %410 = vmatprep.subr.mxu0 0.0
    %411 = vmatpush1.xpose.msra.mxu0 0.0
    %412 = vmatprep.subr.mxu0 0.0
    %413 = vmatpush1.xpose.msra.mxu0 0.0
    %414 = vmatprep.mubr.f32.mxu0 0.0
    %415 = vmatmul.mubr.f32.gmra.mrb[0].mxu0 %v249
    %v416 = vpop.f32.mrb[0].mxu0
    %v417 = vadd.f32 %v90, %v416
    %v418 = vpop.f32.mrb[0].mxu0
    %419 = vmatprep.mubr.f32.mxu0 0.0
    %420 = vmatmul.mubr.f32.gmra.mrb[0].mxu0 %v252
    %v421 = vpop.f32.mrb[0].mxu0
    %v422 = vadd.f32 %v95, %v421
    %v423 = vpop.f32.mrb[0].mxu0
    %424 = vmatprep.mubr.f32.mxu0 0.0
    %425 = vmatmul.mubr.f32.gmra.mrb[0].mxu0 %v255
    %v426 = vpop.f32.mrb[0].mxu0
    %v427 = vadd.f32 %v100, %v426
    %v428 = vpop.f32.mrb[0].mxu0
    %429 = vmatprep.mubr.f32.mxu0 0.0
    %430 = vmatmul.mubr.f32.gmra.mrb[0].mxu0 %v258
    %v431 = vpop.f32.mrb[0].mxu0
    %v432 = vadd.f32 %v105, %v431
    %v433 = vpop.f32.mrb[0].mxu0
    %434 = vmatprep.mubr.f32.mxu0 0.0
    %435 = vmatmul.mubr.f32.gmra.mrb[0].mxu0 %v261
    %v436 = vpop.f32.mrb[0].mxu0
    %v437 = vadd.f32 %v110, %v436
    %v438 = vpop.f32.mrb[0].mxu0
    %439 = vmatprep.mubr.f32.mxu0 0.0
    %440 = vmatmul.mubr.f32.gmra.mrb[0].mxu0 %v264
    %v441 = vpop.f32.mrb[0].mxu0
    %v442 = vadd.f32 %v115, %v441
    %v443 = vpop.f32.mrb[0].mxu0
    %444 = vmatprep.mubr.f32.mxu0 0.0
    %445 = vmatmul.mubr.f32.gmra.mrb[0].mxu0 %v267
    %v446 = vpop.f32.mrb[0].mxu0
    %v447 = vadd.f32 %v120, %v446
    %v448 = vpop.f32.mrb[0].mxu0
    %449 = vmatprep.mubr.f32.mxu0 0.0
    %450 = vmatmul.mubr.f32.gmra.mrb[0].mxu0 %v270
    %v451 = vpop.f32.mrb[0].mxu0
    %v452 = vadd.f32 %v125, %v451
    %v453 = vpop.f32.mrb[0].mxu0
    %454 = vmatprep.mubr.f32.mxu0 0.0
    %455 = vmatmul.mubr.f32.gmra.mrb[0].mxu0 %v273
    %v456 = vpop.f32.mrb[0].mxu0
    %v457 = vadd.f32 %v130, %v456
    %v458 = vpop.f32.mrb[0].mxu0
    %459 = vmatprep.mubr.f32.mxu0 0.0
    %460 = vmatmul.mubr.f32.gmra.mrb[0].mxu0 %v276
    %v461 = vpop.f32.mrb[0].mxu0
    %v462 = vadd.f32 %v135, %v461
    %v463 = vpop.f32.mrb[0].mxu0
    %464 = vmatprep.mubr.f32.mxu0 0.0
    %465 = vmatmul.mubr.f32.gmra.mrb[0].mxu0 %v279
    %v466 = vpop.f32.mrb[0].mxu0
    %v467 = vadd.f32 %v140, %v466
    %v468 = vpop.f32.mrb[0].mxu0
    %469 = vmatprep.mubr.f32.mxu0 0.0
    %470 = vmatmul.mubr.f32.gmra.mrb[0].mxu0 %v282
    %v471 = vpop.f32.mrb[0].mxu0
    %v472 = vadd.f32 %v145, %v471
    %v473 = vpop.f32.mrb[0].mxu0
    %474 = vmatprep.mubr.f32.mxu0 0.0
    %475 = vmatmul.mubr.f32.gmra.mrb[0].mxu0 %v285
    %v476 = vpop.f32.mrb[0].mxu0
    %v477 = vadd.f32 %v150, %v476
    %v478 = vpop.f32.mrb[0].mxu0
    %479 = vmatprep.mubr.f32.mxu0 0.0
    %480 = vmatmul.mubr.f32.gmra.mrb[0].mxu0 %v288
    %v481 = vpop.f32.mrb[0].mxu0
    %v482 = vadd.f32 %v155, %v481
    %v483 = vpop.f32.mrb[0].mxu0
    %484 = vmatprep.mubr.f32.mxu0 0.0
    %485 = vmatmul.mubr.f32.gmra.mrb[0].mxu0 %v291
    %v486 = vpop.f32.mrb[0].mxu0
    %v487 = vadd.f32 %v160, %v486
    %v488 = vpop.f32.mrb[0].mxu0
    %489 = vmatprep.mubr.f32.mxu0 0.0
    %490 = vmatmul.mubr.f32.gmra.mrb[0].mxu0 %v294
    %v491 = vpop.f32.mrb[0].mxu0
    %v492 = vadd.f32 %v165, %v491
    %v493 = vpop.f32.mrb[0].mxu0
    %494 = vmatprep.mubr.f32.mxu0 0.0
    %495 = vmatmul.mubr.f32.gmra.mrb[0].mxu0 %v297
    %v496 = vpop.f32.mrb[0].mxu0
    %v497 = vadd.f32 %v170, %v496
    %v498 = vpop.f32.mrb[0].mxu0
    %499 = vmatprep.mubr.f32.mxu0 0.0
    %500 = vmatmul.mubr.f32.gmra.mrb[0].mxu0 %v300
    %v501 = vpop.f32.mrb[0].mxu0
    %v502 = vadd.f32 %v175, %v501
    %v503 = vpop.f32.mrb[0].mxu0
    %504 = vmatprep.mubr.f32.mxu0 0.0
    %505 = vmatmul.mubr.f32.gmra.mrb[0].mxu0 %v303
    %v506 = vpop.f32.mrb[0].mxu0
    %v507 = vadd.f32 %v180, %v506
    %v508 = vpop.f32.mrb[0].mxu0
    %509 = vmatprep.mubr.f32.mxu0 0.0
    %510 = vmatmul.mubr.f32.gmra.mrb[0].mxu0 %v306
    %v511 = vpop.f32.mrb[0].mxu0
    %v512 = vadd.f32 %v185, %v511
    %v513 = vpop.f32.mrb[0].mxu0
    %514 = vmatprep.mubr.f32.mxu0 0.0
    %515 = vmatmul.mubr.f32.gmra.mrb[0].mxu0 %v309
    %v516 = vpop.f32.mrb[0].mxu0
    %v517 = vadd.f32 %v190, %v516
    %v518 = vpop.f32.mrb[0].mxu0
    %519 = vmatprep.mubr.f32.mxu0 0.0
    %520 = vmatmul.mubr.f32.gmra.mrb[0].mxu0 %v312
    %v521 = vpop.f32.mrb[0].mxu0
    %v522 = vadd.f32 %v195, %v521
    %v523 = vpop.f32.mrb[0].mxu0
    %524 = vmatprep.mubr.f32.mxu0 0.0
    %525 = vmatmul.mubr.f32.gmra.mrb[0].mxu0 %v315
    %v526 = vpop.f32.mrb[0].mxu0
    %v527 = vadd.f32 %v200, %v526
    %v528 = vpop.f32.mrb[0].mxu0
    %529 = vmatprep.mubr.f32.mxu0 0.0
    %530 = vmatmul.mubr.f32.gmra.mrb[0].mxu0 %v318
    %v531 = vpop.f32.mrb[0].mxu0
    %v532 = vadd.f32 %v205, %v531
    %v533 = vpop.f32.mrb[0].mxu0
    %534 = vmatprep.mubr.f32.mxu0 0.0
    %535 = vmatmul.mubr.f32.gmra.mrb[0].mxu0 %v321
    %v536 = vpop.f32.mrb[0].mxu0
    %v537 = vadd.f32 %v210, %v536
    %v538 = vpop.f32.mrb[0].mxu0
    %539 = vmatprep.mubr.f32.mxu0 0.0
    %540 = vmatmul.mubr.f32.gmra.mrb[0].mxu0 %v324
    %v541 = vpop.f32.mrb[0].mxu0
    %v542 = vadd.f32 %v215, %v541
    %v543 = vpop.f32.mrb[0].mxu0
    %544 = vmatprep.mubr.f32.mxu0 0.0
    %545 = vmatmul.mubr.f32.gmra.mrb[0].mxu0 %v327
    %v546 = vpop.f32.mrb[0].mxu0
    %v547 = vadd.f32 %v220, %v546
    %v548 = vpop.f32.mrb[0].mxu0
    %549 = vmatprep.mubr.f32.mxu0 0.0
    %550 = vmatmul.mubr.f32.gmra.mrb[0].mxu0 %v330
    %v551 = vpop.f32.mrb[0].mxu0
    %v552 = vadd.f32 %v225, %v551
    %v553 = vpop.f32.mrb[0].mxu0
    %554 = vmatprep.mubr.f32.mxu0 0.0
    %555 = vmatmul.mubr.f32.gmra.mrb[0].mxu0 %v333
    %v556 = vpop.f32.mrb[0].mxu0
    %v557 = vadd.f32 %v230, %v556
    %v558 = vpop.f32.mrb[0].mxu0
    %559 = vmatprep.mubr.f32.mxu0 0.0
    %560 = vmatmul.mubr.f32.gmra.mrb[0].mxu0 %v336
    %v561 = vpop.f32.mrb[0].mxu0
    %v562 = vadd.f32 %v235, %v561
    %v563 = vpop.f32.mrb[0].mxu0
    %564 = vmatprep.mubr.f32.mxu0 0.0
    %565 = vmatmul.mubr.f32.gmra.mrb[0].mxu0 %v339
    %v566 = vpop.f32.mrb[0].mxu0
    %v567 = vadd.f32 %v240, %v566
    %v568 = vpop.f32.mrb[0].mxu0
    %569 = vmatprep.mubr.f32.mxu0 0.0
    %570 = vmatmul.mubr.f32.gmra.mrb[0].mxu0 %v342
    %v571 = vpop.f32.mrb[0].mxu0
    %v572 = vadd.f32 %v245, %v571
    %v573 = vpop.f32.mrb[0].mxu0
    %574 = vdwg.mxu0
    %v575 = vmax.f32 %v417, 0.0
    %v576 = vmax.f32 %v422, 0.0
    %v577 = vmax.f32 %v427, 0.0
    %v578 = vmax.f32 %v432, 0.0
    %v579 = vmax.f32 %v437, 0.0
    %v580 = vmax.f32 %v442, 0.0
    %v581 = vmax.f32 %v447, 0.0
    %v582 = vmax.f32 %v452, 0.0
    %v583 = vmax.f32 %v457, 0.0
    %v584 = vmax.f32 %v462, 0.0
    %v585 = vmax.f32 %v467, 0.0
    %v586 = vmax.f32 %v472, 0.0
    %v587 = vmax.f32 %v477, 0.0
    %v588 = vmax.f32 %v482, 0.0
    %v589 = vmax.f32 %v487, 0.0
    %v590 = vmax.f32 %v492, 0.0
    %v591 = vmax.f32 %v497, 0.0
    %v592 = vmax.f32 %v502, 0.0
    %v593 = vmax.f32 %v507, 0.0
    %v594 = vmax.f32 %v512, 0.0
    %v595 = vmax.f32 %v517, 0.0
    %v596 = vmax.f32 %v522, 0.0
    %v597 = vmax.f32 %v527, 0.0
    %v598 = vmax.f32 %v532, 0.0
    %v599 = vmax.f32 %v537, 0.0
    %v600 = vmax.f32 %v542, 0.0
    %v601 = vmax.f32 %v547, 0.0
    %v602 = vmax.f32 %v552, 0.0
    %v603 = vmax.f32 %v557, 0.0
    %v604 = vmax.f32 %v562, 0.0
    %v605 = vmax.f32 %v567, 0.0
    %v606 = vmax.f32 %v572, 0.0
    %v607 = vld [vmem:[%s2] sm:$0xff]
    %v608 = vld [vmem:[%s2 + $0x8] sm:$0xff]
    %v609 = vld [vmem:[%s2 + $0x10] sm:$0xff]
    %v610 = vld [vmem:[%s2 + $0x18] sm:$0xff]
    %v611 = vld [vmem:[%s2 + $0x20] sm:$0xff]
    %v612 = vld [vmem:[%s2 + $0x28] sm:$0xff]
    %v613 = vld [vmem:[%s2 + $0x30] sm:$0xff]
    %v614 = vld [vmem:[%s2 + $0x38] sm:$0xff]
    %v615 = vld [vmem:[%s2 + $0x40] sm:$0xff]
    %v616 = vld [vmem:[%s2 + $0x48] sm:$0xff]
    %v617 = vld [vmem:[%s2 + $0x50] sm:$0xff]
    %v618 = vld [vmem:[%s2 + $0x58] sm:$0xff]
    %v619 = vld [vmem:[%s2 + $0x60] sm:$0xff]
    %v620 = vld [vmem:[%s2 + $0x68] sm:$0xff]
    %v621 = vld [vmem:[%s2 + $0x70] sm:$0xff]
    %v622 = vld [vmem:[%s2 + $0x78] sm:$0xff]
    %v623 = vld [vmem:[%s2 + $0x80] sm:$0xff]
    %v624 = vld [vmem:[%s2 + $0x88] sm:$0xff]
    %v625 = vld [vmem:[%s2 + $0x90] sm:$0xff]
    %v626 = vld [vmem:[%s2 + $0x98] sm:$0xff]
    %v627 = vld [vmem:[%s2 + $0xa0] sm:$0xff]
    %v628 = vld [vmem:[%s2 + $0xa8] sm:$0xff]
    %v629 = vld [vmem:[%s2 + $0xb0] sm:$0xff]
    %v630 = vld [vmem:[%s2 + $0xb8] sm:$0xff]
    %v631 = vld [vmem:[%s2 + $0xc0] sm:$0xff]
    %v632 = vld [vmem:[%s2 + $0xc8] sm:$0xff]
    %v633 = vld [vmem:[%s2 + $0xd0] sm:$0xff]
    %v634 = vld [vmem:[%s2 + $0xd8] sm:$0xff]
    %v635 = vld [vmem:[%s2 + $0xe0] sm:$0xff]
    %v636 = vld [vmem:[%s2 + $0xe8] sm:$0xff]
    %v637 = vld [vmem:[%s2 + $0xf0] sm:$0xff]
    %v638 = vld [vmem:[%s2 + $0xf8] sm:$0xff]
    %v639 = vld [vmem:[%s2 + $0x100] sm:$0xff]
    %v640 = vld [vmem:[%s2 + $0x108] sm:$0xff]
    %v641 = vld [vmem:[%s2 + $0x110] sm:$0xff]
    %v642 = vld [vmem:[%s2 + $0x118] sm:$0xff]
    %v643 = vld [vmem:[%s2 + $0x120] sm:$0xff]
    %v644 = vld [vmem:[%s2 + $0x128] sm:$0xff]
    %v645 = vld [vmem:[%s2 + $0x130] sm:$0xff]
    %v646 = vld [vmem:[%s2 + $0x138] sm:$0xff]
    %v647 = vld [vmem:[%s2 + $0x140] sm:$0xff]
    %v648 = vld [vmem:[%s2 + $0x148] sm:$0xff]
    %v649 = vld [vmem:[%s2 + $0x150] sm:$0xff]
    %v650 = vld [vmem:[%s2 + $0x158] sm:$0xff]
    %v651 = vld [vmem:[%s2 + $0x160] sm:$0xff]
    %v652 = vld [vmem:[%s2 + $0x168] sm:$0xff]
    %v653 = vld [vmem:[%s2 + $0x170] sm:$0xff]
    %v654 = vld [vmem:[%s2 + $0x178] sm:$0xff]
    %v655 = vld [vmem:[%s2 + $0x180] sm:$0xff]
    %v656 = vld [vmem:[%s2 + $0x188] sm:$0xff]
    %v657 = vld [vmem:[%s2 + $0x190] sm:$0xff]
    %v658 = vld [vmem:[%s2 + $0x198] sm:$0xff]
    %v659 = vld [vmem:[%s2 + $0x1a0] sm:$0xff]
    %v660 = vld [vmem:[%s2 + $0x1a8] sm:$0xff]
    %v661 = vld [vmem:[%s2 + $0x1b0] sm:$0xff]
    %v662 = vld [vmem:[%s2 + $0x1b8] sm:$0xff]
    %v663 = vld [vmem:[%s2 + $0x1c0] sm:$0xff]
    %v664 = vld [vmem:[%s2 + $0x1c8] sm:$0xff]
    %v665 = vld [vmem:[%s2 + $0x1d0] sm:$0xff]
    %v666 = vld [vmem:[%s2 + $0x1d8] sm:$0xff]
    %v667 = vld [vmem:[%s2 + $0x1e0] sm:$0xff]
    %v668 = vld [vmem:[%s2 + $0x1e8] sm:$0xff]
    %v669 = vld [vmem:[%s2 + $0x1f0] sm:$0xff]
    %v670 = vld [vmem:[%s2 + $0x1f8] sm:$0xff]
    %671 = vset.pattern.permute.xlu0 1
    %672 = vperm.xlu0 %671, %v55
    %v673 = vpop.permute.xlu0 %672
    %675 = vset.pattern.permute.xlu0 1
    %676 = vperm.xlu0 %675, %v56
    %v677 = vpop.permute.xlu0 %676
    %679 = vset.pattern.permute.xlu0 1
    %680 = vperm.xlu0 %679, %v57
    %v681 = vpop.permute.xlu0 %680
    %683 = vset.pattern.permute.xlu0 1
    %684 = vperm.xlu0 %683, %v58
    %v685 = vpop.permute.xlu0 %684
    %687 = vset.pattern.permute.xlu0 1
    %688 = vperm.xlu0 %687, %v59
    %v689 = vpop.permute.xlu0 %688
    %691 = vset.pattern.permute.xlu0 1
    %692 = vperm.xlu0 %691, %v60
    %v693 = vpop.permute.xlu0 %692
    %695 = vset.pattern.permute.xlu0 1
    %696 = vperm.xlu0 %695, %v61
    %v697 = vpop.permute.xlu0 %696
    %699 = vset.pattern.permute.xlu0 1
    %700 = vperm.xlu0 %699, %v62
    %v701 = vpop.permute.xlu0 %700
    %703 = vset.pattern.permute.xlu0 1
    %704 = vperm.xlu0 %703, %v63
    %v705 = vpop.permute.xlu0 %704
    %707 = vset.pattern.permute.xlu0 1
    %708 = vperm.xlu0 %707, %v64
    %v709 = vpop.permute.xlu0 %708
    %711 = vset.pattern.permute.xlu0 1
    %712 = vperm.xlu0 %711, %v65
    %v713 = vpop.permute.xlu0 %712
    %715 = vset.pattern.permute.xlu0 1
    %716 = vperm.xlu0 %715, %v66
    %v717 = vpop.permute.xlu0 %716
    %719 = vset.pattern.permute.xlu0 1
    %720 = vperm.xlu0 %719, %v67
    %v721 = vpop.permute.xlu0 %720
    %723 = vset.pattern.permute.xlu0 1
    %724 = vperm.xlu0 %723, %v68
    %v725 = vpop.permute.xlu0 %724
    %727 = vset.pattern.permute.xlu0 1
    %728 = vperm.xlu0 %727, %v69
    %v729 = vpop.permute.xlu0 %728
    %731 = vset.pattern.permute.xlu0 1
    %732 = vperm.xlu0 %731, %v70
    %v733 = vpop.permute.xlu0 %732
    %735 = vset.pattern.permute.xlu0 1
    %736 = vperm.xlu0 %735, %v71
    %v737 = vpop.permute.xlu0 %736
    %739 = vset.pattern.permute.xlu0 1
    %740 = vperm.xlu0 %739, %v72
    %v741 = vpop.permute.xlu0 %740
    %743 = vset.pattern.permute.xlu0 1
    %744 = vperm.xlu0 %743, %v73
    %v745 = vpop.permute.xlu0 %744
    %747 = vset.pattern.permute.xlu0 1
    %748 = vperm.xlu0 %747, %v74
    %v749 = vpop.permute.xlu0 %748
    %751 = vset.pattern.permute.xlu0 1
    %752 = vperm.xlu0 %751, %v75
    %v753 = vpop.permute.xlu0 %752
    %755 = vset.pattern.permute.xlu0 1
    %756 = vperm.xlu0 %755, %v76
    %v757 = vpop.permute.xlu0 %756
    %759 = vset.pattern.permute.xlu0 1
    %760 = vperm.xlu0 %759, %v77
    %v761 = vpop.permute.xlu0 %760
    %763 = vset.pattern.permute.xlu0 1
    %764 = vperm.xlu0 %763, %v78
    %v765 = vpop.permute.xlu0 %764
    %767 = vset.pattern.permute.xlu0 1
    %768 = vperm.xlu0 %767, %v79
    %v769 = vpop.permute.xlu0 %768
    %771 = vset.pattern.permute.xlu0 1
    %772 = vperm.xlu0 %771, %v80
    %v773 = vpop.permute.xlu0 %772
    %775 = vset.pattern.permute.xlu0 1
    %776 = vperm.xlu0 %775, %v81
    %v777 = vpop.permute.xlu0 %776
    %779 = vset.pattern.permute.xlu0 1
    %780 = vperm.xlu0 %779, %v82
    %v781 = vpop.permute.xlu0 %780
    %783 = vset.pattern.permute.xlu0 1
    %784 = vperm.xlu0 %783, %v83
    %v785 = vpop.permute.xlu0 %784
    %787 = vset.pattern.permute.xlu0 1
    %788 = vperm.xlu0 %787, %v84
    %v789 = vpop.permute.xlu0 %788
    %791 = vset.pattern.permute.xlu0 1
    %792 = vperm.xlu0 %791, %v85
    %v793 = vpop.permute.xlu0 %792
    %795 = vset.pattern.permute.xlu0 1
    %796 = vperm.xlu0 %795, %v86
    %v797 = vpop.permute.xlu0 %796
    %799 = vmatprep.subr.mxu0 0.0
    %800 = vmatpush1.msra.mxu0 %v575
    %801 = vmatprep.subr.mxu0 0.0
    %802 = vmatpush1.msra.mxu0 %v576
    %803 = vmatprep.subr.mxu0 0.0
    %804 = vmatpush1.msra.mxu0 %v577
    %805 = vmatprep.subr.mxu0 0.0
    %806 = vmatpush1.msra.mxu0 %v578
    %807 = vmatprep.subr.mxu0 0.0
    %808 = vmatpush1.msra.mxu0 %v579
    %809 = vmatprep.subr.mxu0 0.0
    %810 = vmatpush1.msra.mxu0 %v580
    %811 = vmatprep.subr.mxu0 0.0
    %812 = vmatpush1.msra.mxu0 %v581
    %813 = vmatprep.subr.mxu0 0.0
    %814 = vmatpush1.msra.mxu0 %v582
    %815 = vmatprep.subr.mxu0 0.0
    %816 = vmatpush1.msra.mxu0 %v583
    %817 = vmatprep.subr.mxu0 0.0
    %818 = vmatpush1.msra.mxu0 %v584
    %819 = vmatprep.subr.mxu0 0.0
    %820 = vmatpush1.msra.mxu0 %v585
    %821 = vmatprep.subr.mxu0 0.0
    %822 = vmatpush1.msra.mxu0 %v586
    %823 = vmatprep.subr.mxu0 0.0
    %824 = vmatpush1.msra.mxu0 %v587
    %825 = vmatprep.subr.mxu0 0.0
    %826 = vmatpush1.msra.mxu0 %v588
    %827 = vmatprep.subr.mxu0 0.0
    %828 = vmatpush1.msra.mxu0 %v589
    %829 = vmatprep.subr.mxu0 0.0
    %830 = vmatpush1.msra.mxu0 %v590
    %831 = vmatprep.subr.mxu0 0.0
    %832 = vmatpush1.msra.mxu0 %v591
    %833 = vmatprep.subr.mxu0 0.0
    %834 = vmatpush1.msra.mxu0 %v592
    %835 = vmatprep.subr.mxu0 0.0
    %836 = vmatpush1.msra.mxu0 %v593
    %837 = vmatprep.subr.mxu0 0.0
    %838 = vmatpush1.msra.mxu0 %v594
    %839 = vmatprep.subr.mxu0 0.0
    %840 = vmatpush1.msra.mxu0 %v595
    %841 = vmatprep.subr.mxu0 0.0
    %842 = vmatpush1.msra.mxu0 %v596
    %843 = vmatprep.subr.mxu0 0.0
    %844 = vmatpush1.msra.mxu0 %v597
    %845 = vmatprep.subr.mxu0 0.0
    %846 = vmatpush1.msra.mxu0 %v598
    %847 = vmatprep.subr.mxu0 0.0
    %848 = vmatpush1.msra.mxu0 %v599
    %849 = vmatprep.subr.mxu0 0.0
    %850 = vmatpush1.msra.mxu0 %v600
    %851 = vmatprep.subr.mxu0 0.0
    %852 = vmatpush1.msra.mxu0 %v601
    %853 = vmatprep.subr.mxu0 0.0
    %854 = vmatpush1.msra.mxu0 %v602
    %855 = vmatprep.subr.mxu0 0.0
    %856 = vmatpush1.msra.mxu0 %v603
    %857 = vmatprep.subr.mxu0 0.0
    %858 = vmatpush1.msra.mxu0 %v604
    %859 = vmatprep.subr.mxu0 0.0
    %860 = vmatpush1.msra.mxu0 %v605
    %861 = vmatprep.subr.mxu0 0.0
    %862 = vmatpush1.msra.mxu0 %v606
    %863 = vmatprep.mubr.f32.mxu0 %v608
    %864 = vmatmul.mubr.f32.gmra.mrb[0].mxu0 %v607
    %v865 = vpop.f32.mrb[0].mxu0
    %v866 = vadd.f32 %v673, %v865
    %v867 = vpop.f32.mrb[0].mxu0
    %868 = vmatprep.mubr.f32.mxu0 %v610
    %869 = vmatmul.mubr.f32.gmra.mrb[0].mxu0 %v609
    %v870 = vpop.f32.mrb[0].mxu0
    %v871 = vadd.f32 %v677, %v870
    %v872 = vpop.f32.mrb[0].mxu0
    %873 = vmatprep.mubr.f32.mxu0 %v612
    %874 = vmatmul.mubr.f32.gmra.mrb[0].mxu0 %v611
    %v875 = vpop.f32.mrb[0].mxu0
    %v876 = vadd.f32 %v681, %v875
    %v877 = vpop.f32.mrb[0].mxu0
    %878 = vmatprep.mubr.f32.mxu0 %v614
    %879 = vmatmul.mubr.f32.gmra.mrb[0].mxu0 %v613
    %v880 = vpop.f32.mrb[0].mxu0
    %v881 = vadd.f32 %v685, %v880
    %v882 = vpop.f32.mrb[0].mxu0
    %883 = vmatprep.mubr.f32.mxu0 %v616
    %884 = vmatmul.mubr.f32.gmra.mrb[0].mxu0 %v615
    %v885 = vpop.f32.mrb[0].mxu0
    %v886 = vadd.f32 %v689, %v885
    %v887 = vpop.f32.mrb[0].mxu0
    %888 = vmatprep.mubr.f32.mxu0 %v618
    %889 = vmatmul.mubr.f32.gmra.mrb[0].mxu0 %v617
    %v890 = vpop.f32.mrb[0].mxu0
    %v891 = vadd.f32 %v693, %v890
    %v892 = vpop.f32.mrb[0].mxu0
    %893 = vmatprep.mubr.f32.mxu0 %v620
    %894 = vmatmul.mubr.f32.gmra.mrb[0].mxu0 %v619
    %v895 = vpop.f32.mrb[0].mxu0
    %v896 = vadd.f32 %v697, %v895
    %v897 = vpop.f32.mrb[0].mxu0
    %898 = vmatprep.mubr.f32.mxu0 %v622
    %899 = vmatmul.mubr.f32.gmra.mrb[0].mxu0 %v621
    %v900 = vpop.f32.mrb[0].mxu0
    %v901 = vadd.f32 %v701, %v900
    %v902 = vpop.f32.mrb[0].mxu0
    %903 = vmatprep.mubr.f32.mxu0 %v624
    %904 = vmatmul.mubr.f32.gmra.mrb[0].mxu0 %v623
    %v905 = vpop.f32.mrb[0].mxu0
    %v906 = vadd.f32 %v705, %v905
    %v907 = vpop.f32.mrb[0].mxu0
    %908 = vmatprep.mubr.f32.mxu0 %v626
    %909 = vmatmul.mubr.f32.gmra.mrb[0].mxu0 %v625
    %v910 = vpop.f32.mrb[0].mxu0
    %v911 = vadd.f32 %v709, %v910
    %v912 = vpop.f32.mrb[0].mxu0
    %913 = vmatprep.mubr.f32.mxu0 %v628
    %914 = vmatmul.mubr.f32.gmra.mrb[0].mxu0 %v627
    %v915 = vpop.f32.mrb[0].mxu0
    %v916 = vadd.f32 %v713, %v915
    %v917 = vpop.f32.mrb[0].mxu0
    %918 = vmatprep.mubr.f32.mxu0 %v630
    %919 = vmatmul.mubr.f32.gmra.mrb[0].mxu0 %v629
    %v920 = vpop.f32.mrb[0].mxu0
    %v921 = vadd.f32 %v717, %v920
    %v922 = vpop.f32.mrb[0].mxu0
    %923 = vmatprep.mubr.f32.mxu0 %v632
    %924 = vmatmul.mubr.f32.gmra.mrb[0].mxu0 %v631
    %v925 = vpop.f32.mrb[0].mxu0
    %v926 = vadd.f32 %v721, %v925
    %v927 = vpop.f32.mrb[0].mxu0
    %928 = vmatprep.mubr.f32.mxu0 %v634
    %929 = vmatmul.mubr.f32.gmra.mrb[0].mxu0 %v633
    %v930 = vpop.f32.mrb[0].mxu0
    %v931 = vadd.f32 %v725, %v930
    %v932 = vpop.f32.mrb[0].mxu0
    %933 = vmatprep.mubr.f32.mxu0 %v636
    %934 = vmatmul.mubr.f32.gmra.mrb[0].mxu0 %v635
    %v935 = vpop.f32.mrb[0].mxu0
    %v936 = vadd.f32 %v729, %v935
    %v937 = vpop.f32.mrb[0].mxu0
    %938 = vmatprep.mubr.f32.mxu0 %v638
    %939 = vmatmul.mubr.f32.gmra.mrb[0].mxu0 %v637
    %v940 = vpop.f32.mrb[0].mxu0
    %v941 = vadd.f32 %v733, %v940
    %v942 = vpop.f32.mrb[0].mxu0
    %943 = vmatprep.mubr.f32.mxu0 %v640
    %944 = vmatmul.mubr.f32.gmra.mrb[0].mxu0 %v639
    %v945 = vpop.f32.mrb[0].mxu0
    %v946 = vadd.f32 %v737, %v945
    %v947 = vpop.f32.mrb[0].mxu0
    %948 = vmatprep.mubr.f32.mxu0 %v642
    %949 = vmatmul.mubr.f32.gmra.mrb[0].mxu0 %v641
    %v950 = vpop.f32.mrb[0].mxu0
    %v951 = vadd.f32 %v741, %v950
    %v952 = vpop.f32.mrb[0].mxu0
    %953 = vmatprep.mubr.f32.mxu0 %v644
    %954 = vmatmul.mubr.f32.gmra.mrb[0].mxu0 %v643
    %v955 = vpop.f32.mrb[0].mxu0
    %v956 = vadd.f32 %v745, %v955
    %v957 = vpop.f32.mrb[0].mxu0
    %958 = vmatprep.mubr.f32.mxu0 %v646
    %959 = vmatmul.mubr.f32.gmra.mrb[0].mxu0 %v645
    %v960 = vpop.f32.mrb[0].mxu0
    %v961 = vadd.f32 %v749, %v960
    %v962 = vpop.f32.mrb[0].mxu0
    %963 = vmatprep.mubr.f32.mxu0 %v648
    %964 = vmatmul.mubr.f32.gmra.mrb[0].mxu0 %v647
    %v965 = vpop.f32.mrb[0].mxu0
    %v966 = vadd.f32 %v753, %v965
    %v967 = vpop.f32.mrb[0].mxu0
    %968 = vmatprep.mubr.f32.mxu0 %v650
    %969 = vmatmul.mubr.f32.gmra.mrb[0].mxu0 %v649
    %v970 = vpop.f32.mrb[0].mxu0
    %v971 = vadd.f32 %v757, %v970
    %v972 = vpop.f32.mrb[0].mxu0
    %973 = vmatprep.mubr.f32.mxu0 %v652
    %974 = vmatmul.mubr.f32.gmra.mrb[0].mxu0 %v651
    %v975 = vpop.f32.mrb[0].mxu0
    %v976 = vadd.f32 %v761, %v975
    %v977 = vpop.f32.mrb[0].mxu0
    %978 = vmatprep.mubr.f32.mxu0 %v654
    %979 = vmatmul.mubr.f32.gmra.mrb[0].mxu0 %v653
    %v980 = vpop.f32.mrb[0].mxu0
    %v981 = vadd.f32 %v765, %v980
    %v982 = vpop.f32.mrb[0].mxu0
    %983 = vmatprep.mubr.f32.mxu0 %v656
    %984 = vmatmul.mubr.f32.gmra.mrb[0].mxu0 %v655
    %v985 = vpop.f32.mrb[0].mxu0
    %v986 = vadd.f32 %v769, %v985
    %v987 = vpop.f32.mrb[0].mxu0
    %988 = vmatprep.mubr.f32.mxu0 %v658
    %989 = vmatmul.mubr.f32.gmra.mrb[0].mxu0 %v657
    %v990 = vpop.f32.mrb[0].mxu0
    %v991 = vadd.f32 %v773, %v990
    %v992 = vpop.f32.mrb[0].mxu0
    %993 = vmatprep.mubr.f32.mxu0 %v660
    %994 = vmatmul.mubr.f32.gmra.mrb[0].mxu0 %v659
    %v995 = vpop.f32.mrb[0].mxu0
    %v996 = vadd.f32 %v777, %v995
    %v997 = vpop.f32.mrb[0].mxu0
    %998 = vmatprep.mubr.f32.mxu0 %v662
    %999 = vmatmul.mubr.f32.gmra.mrb[0].mxu0 %v661
    %v1000 = vpop.f32.mrb[0].mxu0
    %v1001 = vadd.f32 %v781, %v1000
    %v1002 = vpop.f32.mrb[0].mxu0
    %1003 = vmatprep.mubr.f32.mxu0 %v664
    %1004 = vmatmul.mubr.f32.gmra.mrb[0].mxu0 %v663
    %v1005 = vpop.f32.mrb[0].mxu0
    %v1006 = vadd.f32 %v785, %v1005
    %v1007 = vpop.f32.mrb[0].mxu0
    %1008 = vmatprep.mubr.f32.mxu0 %v666
    %1009 = vmatmul.mubr.f32.gmra.mrb[0].mxu0 %v665
    %v1010 = vpop.f32.mrb[0].mxu0
    %v1011 = vadd.f32 %v789, %v1010
    %v1012 = vpop.f32.mrb[0].mxu0
    %1013 = vmatprep.mubr.f32.mxu0 %v668
    %1014 = vmatmul.mubr.f32.gmra.mrb[0].mxu0 %v667
    %v1015 = vpop.f32.mrb[0].mxu0
    %v1016 = vadd.f32 %v793, %v1015
    %v1017 = vpop.f32.mrb[0].mxu0
    %1018 = vmatprep.mubr.f32.mxu0 %v670
    %1019 = vmatmul.mubr.f32.gmra.mrb[0].mxu0 %v669
    %v1020 = vpop.f32.mrb[0].mxu0
    %v1021 = vadd.f32 %v797, %v1020
    %v1022 = vpop.f32.mrb[0].mxu0
    %1023 = vdwg.mxu0
    %v1024 = vmax.f32 %v866, 0.0
    %v1025 = vmax.f32 %v871, 0.0
    %v1026 = vmax.f32 %v876, 0.0
    %v1027 = vmax.f32 %v881, 0.0
    %v1028 = vmax.f32 %v886, 0.0
    %v1029 = vmax.f32 %v891, 0.0
    %v1030 = vmax.f32 %v896, 0.0
    %v1031 = vmax.f32 %v901, 0.0
    %v1032 = vmax.f32 %v906, 0.0
    %v1033 = vmax.f32 %v911, 0.0
    %v1034 = vmax.f32 %v916, 0.0
    %v1035 = vmax.f32 %v921, 0.0
    %v1036 = vmax.f32 %v926, 0.0
    %v1037 = vmax.f32 %v931, 0.0
    %v1038 = vmax.f32 %v936, 0.0
    %v1039 = vmax.f32 %v941, 0.0
    %v1040 = vmax.f32 %v946, 0.0
    %v1041 = vmax.f32 %v951, 0.0
    %v1042 = vmax.f32 %v956, 0.0
    %v1043 = vmax.f32 %v961, 0.0
    %v1044 = vmax.f32 %v966, 0.0
    %v1045 = vmax.f32 %v971, 0.0
    %v1046 = vmax.f32 %v976, 0.0
    %v1047 = vmax.f32 %v981, 0.0
    %v1048 = vmax.f32 %v986, 0.0
    %v1049 = vmax.f32 %v991, 0.0
    %v1050 = vmax.f32 %v996, 0.0
    %v1051 = vmax.f32 %v1001, 0.0
    %v1052 = vmax.f32 %v1006, 0.0
    %v1053 = vmax.f32 %v1011, 0.0
    %v1054 = vmax.f32 %v1016, 0.0
    %v1055 = vmax.f32 %v1021, 0.0
    %v1056 = vld [vmem:[%s3] sm:$0x3]
    %v1057 = vld [vmem:[%s4] sm:$0x1]
    %1059 = vset.pattern.permute.xlu0 2
    %1060 = vperm.xlu0 %1059, %v1057
    %v1061 = vpop.permute.xlu0 %1060
    %v1064 = vlaneseq
    %v1065 = vshrl.u32 %v1064, 7
    %v1066 = vsub.s32 0, %v1065
    %v1067 = vrot.slane %v1056, %v1066
    %v1068 = vlaneseq
    %v1069 = vshrl.u32 %v1068, 7
    %v1070 = vsub.s32 1, %v1069
    %v1071 = vrot.slane %v1056, %v1070
    %1074 = vmatprep.subr.mxu0 0.0
    %1075 = vmatpush1.msra.mxu0 %v1024
    %1076 = vmatprep.subr.mxu0 0.0
    %1077 = vmatpush1.msra.mxu0 %v1025
    %1078 = vmatprep.subr.mxu0 0.0
    %1079 = vmatpush1.msra.mxu0 %v1026
    %1080 = vmatprep.subr.mxu0 0.0
    %1081 = vmatpush1.msra.mxu0 %v1027
    %1082 = vmatprep.subr.mxu0 0.0
    %1083 = vmatpush1.msra.mxu0 %v1028
    %1084 = vmatprep.subr.mxu0 0.0
    %1085 = vmatpush1.msra.mxu0 %v1029
    %1086 = vmatprep.subr.mxu0 0.0
    %1087 = vmatpush1.msra.mxu0 %v1030
    %1088 = vmatprep.subr.mxu0 0.0
    %1089 = vmatpush1.msra.mxu0 %v1031
    %1090 = vmatprep.subr.mxu0 0.0
    %1091 = vmatpush1.msra.mxu0 %v1032
    %1092 = vmatprep.subr.mxu0 0.0
    %1093 = vmatpush1.msra.mxu0 %v1033
    %1094 = vmatprep.subr.mxu0 0.0
    %1095 = vmatpush1.msra.mxu0 %v1034
    %1096 = vmatprep.subr.mxu0 0.0
    %1097 = vmatpush1.msra.mxu0 %v1035
    %1098 = vmatprep.subr.mxu0 0.0
    %1099 = vmatpush1.msra.mxu0 %v1036
    %1100 = vmatprep.subr.mxu0 0.0
    %1101 = vmatpush1.msra.mxu0 %v1037
    %1102 = vmatprep.subr.mxu0 0.0
    %1103 = vmatpush1.msra.mxu0 %v1038
    %1104 = vmatprep.subr.mxu0 0.0
    %1105 = vmatpush1.msra.mxu0 %v1039
    %1106 = vmatprep.subr.mxu0 0.0
    %1107 = vmatpush1.msra.mxu0 %v1040
    %1108 = vmatprep.subr.mxu0 0.0
    %1109 = vmatpush1.msra.mxu0 %v1041
    %1110 = vmatprep.subr.mxu0 0.0
    %1111 = vmatpush1.msra.mxu0 %v1042
    %1112 = vmatprep.subr.mxu0 0.0
    %1113 = vmatpush1.msra.mxu0 %v1043
    %1114 = vmatprep.subr.mxu0 0.0
    %1115 = vmatpush1.msra.mxu0 %v1044
    %1116 = vmatprep.subr.mxu0 0.0
    %1117 = vmatpush1.msra.mxu0 %v1045
    %1118 = vmatprep.subr.mxu0 0.0
    %1119 = vmatpush1.msra.mxu0 %v1046
    %1120 = vmatprep.subr.mxu0 0.0
    %1121 = vmatpush1.msra.mxu0 %v1047
    %1122 = vmatprep.subr.mxu0 0.0
    %1123 = vmatpush1.msra.mxu0 %v1048
    %1124 = vmatprep.subr.mxu0 0.0
    %1125 = vmatpush1.msra.mxu0 %v1049
    %1126 = vmatprep.subr.mxu0 0.0
    %1127 = vmatpush1.msra.mxu0 %v1050
    %1128 = vmatprep.subr.mxu0 0.0
    %1129 = vmatpush1.msra.mxu0 %v1051
    %1130 = vmatprep.subr.mxu0 0.0
    %1131 = vmatpush1.msra.mxu0 %v1052
    %1132 = vmatprep.subr.mxu0 0.0
    %1133 = vmatpush1.msra.mxu0 %v1053
    %1134 = vmatprep.subr.mxu0 0.0
    %1135 = vmatpush1.msra.mxu0 %v1054
    %1136 = vmatprep.subr.mxu0 0.0
    %1137 = vmatpush1.msra.mxu0 %v1055
    %1138 = vmatprep.mubr.f32.mxu0 %v1071
    %1139 = vmatmul.mubr.f32.gmra.mrb[0].mxu0 %v1067
    %v1140 = vpop.f32.mrb[0].mxu0
    %v1141 = vadd.f32 %v1061, %v1140
    %v1142 = vpop.f32.mrb[0].mxu0
    %1143 = vdwg.mxu0
    %vm1144 = vcmask 122880
    %1145 = vst.msk [vmem:[#allocation2] sm:$0x1] %vm1144, %v1141
    // Predicated region
    $region22: #{tpu_custom_call.1} parent=1 // pred_check
      _
    $region23: #{tpu_custom_call.1} parent=1 // pred_check_branch
      %1147 = sbr.rel (0) target = $region25
    $region24: #{tpu_custom_call.1} parent=1 // pred_region
      %s1149 = ssub.s32 16, 16
      %1150 = vsyncadd [#allocation3], %s1149
      %s1152 = sshll.u32 [#allocation2], 4
      %s1153 = int_to_ptr.vmem [resolvable:$true] %s1152
      %1155 = dma.vmem_to_hbm [thread:$0]  %s1153, 16, %s5, [#allocation3]
    $region25: #{tpu_custom_call.1} parent=1 // pred_fallthru
      _
    // Predicated region
    $region26: #{tpu_custom_call.1} parent=1 // pred_check
      _
    $region27: #{tpu_custom_call.1} parent=1 // pred_check_branch
      %1157 = sbr.rel (0) target = $region29
    $region28: #{tpu_custom_call.1} parent=1 // pred_region
      %1158 = dma.done [#allocation3], 16
    $region29: #{tpu_custom_call.1} parent=1 // pred_fallthru
      _
    %1159 = vsyncpa [#allocation3], 1

</llo_original>
